<compile_context>
chip_gen: v7x
topology: tpu7x:2x2x1
jax: 0.10.0
libtpu: 0.0.40
codegen_flags: <defaults>
</compile_context>

<pallas_src>
import jax
import jax.numpy as jnp
from jax.experimental import pallas as pl
from jax.experimental.pallas import tpu as pltpu


def _round_up(x, m):
    return ((x + m - 1) // m) * m


def _critic_kernel(state_ref, action_ref, w1s_ref, w1a_ref, b13_ref,
                   w2_ref, b2_ref, w4_ref, b4_ref, wq_ref, bq_ref, q_ref):
    cdt = w2_ref.dtype          # compute dtype for the big MXU matmuls
    HP = w2_ref.shape[0]        # padded hidden width (multiple of 128)

    # ---- Layer 1, both heads fused along lanes, kept in f32 for accuracy ----
    # hg = [state|action] @ [w1|w3] + [b1|b3], done as two K-small matmuls so
    # the wrapper never materializes a padded concat buffer.
    hg = (jnp.dot(state_ref[...], w1s_ref[...], preferred_element_type=jnp.float32)
          + jnp.dot(action_ref[...], w1a_ref[...], preferred_element_type=jnp.float32)
          + b13_ref[...])
    hg = jnp.maximum(hg, 0.0)

    h = hg[:, :HP].astype(cdt)   # Q1 head activations
    g = hg[:, HP:].astype(cdt)   # Q2 head activations

    # ---- Layer 2 of each head: (TB, HP) @ (HP, HP), f32 accumulation ----
    h2 = jnp.maximum(
        jnp.dot(h, w2_ref[...], preferred_element_type=jnp.float32) + b2_ref[...], 0.0)
    g2 = jnp.maximum(
        jnp.dot(g, w4_ref[...], preferred_element_type=jnp.float32) + b4_ref[...], 0.0)

    # ---- Fused lane-dense output layer ----
    # (TB, 2*HP) @ (2*HP, 128): q1 lives in lane 0 (from rows [0,HP)),
    # q2 in lane 1 (from rows [HP,2*HP)).  One MXU stream, unmasked store.
    hg2 = jnp.concatenate([h2.astype(cdt), g2.astype(cdt)], axis=1)
    q_ref[...] = (jnp.dot(hg2, wq_ref[...], preferred_element_type=jnp.float32)
                  + bq_ref[...])


def init_critic_params(key, state_dim, action_dim, hidden_dim=256):
    """Deterministic init mirroring nn.Linear default (uniform +-1/sqrt(fan_in)).

    Weights stored as (in_features, out_features); biases as (1, out)."""
    in_dim = state_dim + action_dim

    def linear(k, fan_in, fan_out):
        kw, kb = jax.random.split(k)
        bound = 1.0 / jnp.sqrt(jnp.float32(fan_in))
        w = jax.random.uniform(kw, (fan_in, fan_out), jnp.float32, -bound, bound)
        b = jax.random.uniform(kb, (1, fan_out), jnp.float32, -bound, bound)
        return w, b

    keys = jax.random.split(key, 6)
    w1, b1 = linear(keys[0], in_dim, hidden_dim)
    w2, b2 = linear(keys[1], hidden_dim, hidden_dim)
    wq1, bq1 = linear(keys[2], hidden_dim, 1)
    w3, b3 = linear(keys[3], in_dim, hidden_dim)
    w4, b4 = linear(keys[4], hidden_dim, hidden_dim)
    wq2, bq2 = linear(keys[5], hidden_dim, 1)
    return dict(w1=w1, b1=b1, w2=w2, b2=b2, wq1=wq1, bq1=bq1,
                w3=w3, b3=b3, w4=w4, b4=b4, wq2=wq2, bq2=bq2)


def prepack_critic_params(params, state_dim, *, compute_dtype=jnp.bfloat16):
    """Pack/pad weights ONCE (hoisted out of the per-forward path).

    Layer 1 stays f32 (inputs are never quantized); layers 2/3 are stored in
    `compute_dtype` (bf16 by default) for native-rate MXU matmuls."""
    H = params["w1"].shape[1]
    in_dim = params["w1"].shape[0]
    action_dim = in_dim - state_dim
    HP = _round_up(H, 128)
    OUT = 128
    cdt = compute_dtype
    f32 = jnp.float32

    # Layer 1: both heads packed along lanes; rows split into state / action
    # blocks so the kernel consumes state and action directly (no concat).
    w1s = (jnp.zeros((state_dim, 2 * HP), f32)
           .at[:, :H].set(params["w1"][:state_dim].astype(f32))
           .at[:, HP:HP + H].set(params["w3"][:state_dim].astype(f32)))
    w1a = (jnp.zeros((action_dim, 2 * HP), f32)
           .at[:, :H].set(params["w1"][state_dim:].astype(f32))
           .at[:, HP:HP + H].set(params["w3"][state_dim:].astype(f32)))
    b13 = (jnp.zeros((1, 2 * HP), f32)
           .at[:, :H].set(params["b1"])
           .at[:, HP:HP + H].set(params["b3"]))

    w2p = jnp.zeros((HP, HP), cdt).at[:H, :H].set(params["w2"].astype(cdt))
    b2p = jnp.zeros((1, HP), f32).at[:, :H].set(params["b2"])
    w4p = jnp.zeros((HP, HP), cdt).at[:H, :H].set(params["w4"].astype(cdt))
    b4p = jnp.zeros((1, HP), f32).at[:, :H].set(params["b4"])

    # Fused output weight: q1 <- lane 0 of rows [0,HP), q2 <- lane 1 of rows
    # [HP, 2*HP).  Padding is exact (zeros propagate as zeros).
    wq = (jnp.zeros((2 * HP, OUT), cdt)
          .at[:H, 0:1].set(params["wq1"].astype(cdt))
          .at[HP:HP + H, 1:2].set(params["wq2"].astype(cdt)))
    bq = (jnp.zeros((1, OUT), f32)
          .at[:, 0:1].set(params["bq1"])
          .at[:, 1:2].set(params["bq2"]))

    return dict(w1s=w1s, w1a=w1a, b13=b13, w2=w2p, b2=b2p, w4=w4p, b4=b4p,
                wq=wq, bq=bq)


def _pick_batch_tile(B, batch_tile):
    if B >= 256:
        # >= 2 grid steps so both v7x TensorCores get work ("parallel" axis);
        # 128-aligned tiles keep vreg/MXU tiling clean.
        tb = _round_up(pl.cdiv(B, 2), 128)
    else:
        tb = _round_up(B, 8)            # tiny batch: single sublane-aligned tile
    return max(8, _round_up(min(batch_tile, tb), 8))


def critic_forward(state, action, params=None, *, packed=None, is_discrete=False,
                   compute_dtype=jnp.bfloat16, batch_tile=None):
    """Matches Critic.forward: returns (q1, q2), each (batch, 1) float32.

    Pass `packed=prepack_critic_params(...)` to skip per-call weight packing."""
    state = state.astype(jnp.float32)
    if is_discrete and action.ndim == 1:
        # TODO(synk): one-hot width inferred from the layer-1 weights; the torch
        # code's num_classes=action.shape[-1] is only meaningful post-one-hot.
        # Kept in plain JAX (index op, not the hot path).
        if packed is not None:
            n_act = packed["w1a"].shape[0]
        else:
            n_act = params["w1"].shape[0] - state.shape[1]
        action = jax.nn.one_hot(action.astype(jnp.int32), num_classes=n_act,
                                dtype=jnp.float32)
    action = action.astype(jnp.float32)

    if packed is None:
        packed = prepack_critic_params(params, state.shape[1],
                                       compute_dtype=compute_dtype)

    B, state_dim = state.shape
    action_dim = action.shape[1]
    HP = packed["w2"].shape[0]
    OUT = packed["wq"].shape[1]
    cdt = packed["w2"].dtype
    itemsize = jnp.dtype(cdt).itemsize

    if batch_tile is None:
        # Bigger tiles amortize the ~0.35us/step grid overhead for large B.
        batch_tile = 4096 if cdt == jnp.bfloat16 else 2048

    TB = _pick_batch_tile(B, batch_tile)
    BP = _round_up(B, TB)
    if BP != B:  # pad batch rows only (feature dims stay un-padded / un-concat'd)
        state = jnp.zeros((BP, state_dim), jnp.float32).at[:B].set(state)
        action = jnp.zeros((BP, action_dim), jnp.float32).at[:B].set(action)

    def const(shape):
        # Resident weight block: same tile for every grid step.
        return pl.BlockSpec(shape, lambda i: (0, 0))

    flops = 2 * BP * ((state_dim + action_dim) * 2 * HP + 2 * HP * HP + 2 * HP * OUT)
    weight_bytes = ((state_dim + action_dim) * 2 * HP * 4 + 2 * HP * 4   # layer-1 (f32)
                    + 2 * HP * HP * itemsize + 2 * HP * 4                 # layer-2 + biases
                    + 2 * HP * OUT * itemsize + OUT * 4)                  # fused output
    bytes_accessed = (BP * (state_dim + action_dim) * 4   # input tiles (no pad/concat)
                      + weight_bytes                       # resident weights
                      + BP * OUT * 4)                      # lane-dense output tiles

    q = pl.pallas_call(
        _critic_kernel,
        out_shape=jax.ShapeDtypeStruct((BP, OUT), jnp.float32),
        grid=(BP // TB,),
        in_specs=[
            pl.BlockSpec((TB, state_dim), lambda i: (i, 0)),   # state: batch-tiled
            pl.BlockSpec((TB, action_dim), lambda i: (i, 0)),  # action: batch-tiled
            const((state_dim, 2 * HP)),                        # layer-1 state rows
            const((action_dim, 2 * HP)),                       # layer-1 action rows
            const((1, 2 * HP)),                                # fused layer-1 bias
            const((HP, HP)), const((1, HP)),                   # layer 2, head 1
            const((HP, HP)), const((1, HP)),                   # layer 2, head 2
            const((2 * HP, OUT)),                              # fused output weight
            const((1, OUT)),                                   # fused output bias
        ],
        out_specs=pl.BlockSpec((TB, OUT), lambda i: (i, 0)),
        compiler_params=pltpu.CompilerParams(
            dimension_semantics=("parallel",),
            vmem_limit_bytes=40 * 1024 * 1024),   # lift v5e's 16 MiB scoped default
        cost_estimate=pl.CostEstimate(flops=flops, transcendentals=0,
                                      bytes_accessed=bytes_accessed),
    )(state, action, packed["w1s"], packed["w1a"], packed["b13"],
      packed["w2"], packed["b2"], packed["w4"], packed["b4"],
      packed["wq"], packed["bq"])

    return q[:B, 0:1], q[:B, 1:2]


def _reference_forward(state, action, params):
    sa = jnp.concatenate([state, action], axis=1)
    h = jnp.maximum(sa @ params["w1"] + params["b1"], 0.0)
    h = jnp.maximum(h @ params["w2"] + params["b2"], 0.0)
    q1 = h @ params["wq1"] + params["bq1"]
    g = jnp.maximum(sa @ params["w3"] + params["b3"], 0.0)
    g = jnp.maximum(g @ params["w4"] + params["b4"], 0.0)
    q2 = g @ params["wq2"] + params["bq2"]
    return q1, q2


if __name__ == "__main__":
    key = jax.random.PRNGKey(0)
    k_params, k_state, k_action = jax.random.split(key, 3)

    batch, state_dim, action_dim, hidden_dim = 8, 16, 8, 32

    params = init_critic_params(k_params, state_dim, action_dim, hidden_dim)
    state = jax.random.normal(k_state, (batch, state_dim), jnp.float32)
    action = jax.random.normal(k_action, (batch, action_dim), jnp.float32)
    r1, r2 = _reference_forward(state, action, params)

    # --- f32 compute path (exact), params packed on the fly ---
    q1, q2 = critic_forward(state, action, params, compute_dtype=jnp.float32)
    jax.block_until_ready((q1, q2))
    assert q1.shape == (batch, 1) and q2.shape == (batch, 1)
    assert jnp.allclose(q1, r1, atol=1e-3, rtol=1e-3)
    assert jnp.allclose(q2, r2, atol=1e-3, rtol=1e-3)

    # --- default bf16 path (f32 layer 1 + f32 accumulation), prepacked once ---
    packed_bf16 = prepack_critic_params(params, state_dim)
    hq1, hq2 = critic_forward(state, action, packed=packed_bf16)
    jax.block_until_ready((hq1, hq2))
    assert jnp.allclose(hq1, r1, atol=1e-1, rtol=1e-1)
    assert jnp.allclose(hq2, r2, atol=1e-1, rtol=1e-1)

    # --- multi-tile grid (B=300 -> TB=128, 3 grid steps), f32 exact ---
    big_b = 300
    kb1, kb2 = jax.random.split(jax.random.PRNGKey(1))
    bstate = jax.random.normal(kb1, (big_b, state_dim), jnp.float32)
    baction = jax.random.normal(kb2, (big_b, action_dim), jnp.float32)
    br1, br2 = _reference_forward(bstate, baction, params)
    packed_f32 = prepack_critic_params(params, state_dim, compute_dtype=jnp.float32)
    bq1, bq2 = critic_forward(bstate, baction, packed=packed_f32, batch_tile=128)
    jax.block_until_ready((bq1, bq2))
    assert bq1.shape == (big_b, 1) and bq2.shape == (big_b, 1)
    assert jnp.allclose(bq1, br1, atol=1e-3, rtol=1e-3)
    assert jnp.allclose(bq2, br2, atol=1e-3, rtol=1e-3)

    # --- bf16, auto tile pick (B=300 -> TB=256, 2 "parallel" grid steps) ---
    bq1h, bq2h = critic_forward(bstate, baction, packed=packed_bf16)
    jax.block_until_ready((bq1h, bq2h))
    assert jnp.allclose(bq1h, br1, atol=1e-1, rtol=1e-1)
    assert jnp.allclose(bq2h, br2, atol=1e-1, rtol=1e-1)

    print("KERNEL_OK")
</pallas_src>

<mosaic_0001>
module attributes {stable_mosaic.version = 11 : i64} {
  func.func @_critic_kernel(%arg0: i32, %arg1: memref<8x16xf32, #tpu.memory_space<vmem>>, %arg2: memref<8x8xf32, #tpu.memory_space<vmem>>, %arg3: memref<16x256xf32, #tpu.memory_space<vmem>>, %arg4: memref<8x256xf32, #tpu.memory_space<vmem>>, %arg5: memref<1x256xf32, #tpu.memory_space<vmem>>, %arg6: memref<128x128xf32, #tpu.memory_space<vmem>>, %arg7: memref<1x128xf32, #tpu.memory_space<vmem>>, %arg8: memref<128x128xf32, #tpu.memory_space<vmem>>, %arg9: memref<1x128xf32, #tpu.memory_space<vmem>>, %arg10: memref<256x128xf32, #tpu.memory_space<vmem>>, %arg11: memref<1x128xf32, #tpu.memory_space<vmem>>, %arg12: memref<8x128xf32, #tpu.memory_space<vmem>>) attributes {dimension_semantics = [#tpu.dimension_semantics<parallel>], iteration_bounds = array<i64: 1>, scalar_prefetch = 0 : i64, scratch_operands = 0 : i64, tpu.core_type = #tpu.core_type<tc>, window_params = [{transform_indices = @transform_0, window_bounds = array<i64: 8, 16>}, {transform_indices = @transform_1, window_bounds = array<i64: 8, 8>}, {pipeline_mode = #tpu.pipeline_mode<synchronous>, transform_indices = @transform_2, window_bounds = array<i64: 16, 256>}, {pipeline_mode = #tpu.pipeline_mode<synchronous>, transform_indices = @transform_3, window_bounds = array<i64: 8, 256>}, {pipeline_mode = #tpu.pipeline_mode<synchronous>, transform_indices = @transform_4, window_bounds = array<i64: 1, 256>}, {pipeline_mode = #tpu.pipeline_mode<synchronous>, transform_indices = @transform_5, window_bounds = array<i64: 128, 128>}, {pipeline_mode = #tpu.pipeline_mode<synchronous>, transform_indices = @transform_6, window_bounds = array<i64: 1, 128>}, {pipeline_mode = #tpu.pipeline_mode<synchronous>, transform_indices = @transform_7, window_bounds = array<i64: 128, 128>}, {pipeline_mode = #tpu.pipeline_mode<synchronous>, transform_indices = @transform_8, window_bounds = array<i64: 1, 128>}, {pipeline_mode = #tpu.pipeline_mode<synchronous>, transform_indices = @transform_9, window_bounds = array<i64: 256, 128>}, {pipeline_mode = #tpu.pipeline_mode<synchronous>, transform_indices = @transform_10, window_bounds = array<i64: 1, 128>}, {transform_indices = @transform_11, window_bounds = array<i64: 8, 128>}]} {
    %c0 = arith.constant 0 : index
    %c0_0 = arith.constant 0 : index
    %0 = vector.load %arg1[%c0, %c0_0] : memref<8x16xf32, #tpu.memory_space<vmem>>, vector<8x16xf32>
    %c0_1 = arith.constant 0 : index
    %c0_2 = arith.constant 0 : index
    %1 = vector.load %arg3[%c0_1, %c0_2] : memref<16x256xf32, #tpu.memory_space<vmem>>, vector<16x256xf32>
    %cst = arith.constant dense<0.000000e+00> : vector<8x256xf32>
    %2 = tpu.matmul %0, %1, %cst {dimension_numbers = #tpu.dot_dimension_numbers<[1], [0], [0], [1], [0, 0, 1, 1], [], []>} : vector<8x16xf32>, vector<16x256xf32>, vector<8x256xf32> -> vector<8x256xf32>
    %c0_3 = arith.constant 0 : index
    %c0_4 = arith.constant 0 : index
    %3 = vector.load %arg2[%c0_3, %c0_4] : memref<8x8xf32, #tpu.memory_space<vmem>>, vector<8x8xf32>
    %c0_5 = arith.constant 0 : index
    %c0_6 = arith.constant 0 : index
    %4 = vector.load %arg4[%c0_5, %c0_6] : memref<8x256xf32, #tpu.memory_space<vmem>>, vector<8x256xf32>
    %cst_7 = arith.constant dense<0.000000e+00> : vector<8x256xf32>
    %5 = tpu.matmul %3, %4, %cst_7 {dimension_numbers = #tpu.dot_dimension_numbers<[1], [0], [0], [1], [0, 0, 1, 1], [], []>} : vector<8x8xf32>, vector<8x256xf32>, vector<8x256xf32> -> vector<8x256xf32>
    %6 = arith.addf %2, %5 : vector<8x256xf32>
    %c0_8 = arith.constant 0 : index
    %c0_9 = arith.constant 0 : index
    %7 = vector.load %arg5[%c0_8, %c0_9] : memref<1x256xf32, #tpu.memory_space<vmem>>, vector<1x256xf32>
    %8 = vector.broadcast %7 : vector<1x256xf32> to vector<8x256xf32>
    %9 = arith.addf %6, %8 : vector<8x256xf32>
    %cst_10 = arith.constant 0.000000e+00 : f32
    %10 = vector.broadcast %cst_10 : f32 to vector<8x256xf32>
    %11 = arith.maximumf %9, %10 : vector<8x256xf32>
    %12 = vector.extract_strided_slice %11 {offsets = [0, 0], sizes = [8, 128], strides = [1, 1]} : vector<8x256xf32> to vector<8x128xf32>
    %13 = vector.extract_strided_slice %11 {offsets = [0, 128], sizes = [8, 128], strides = [1, 1]} : vector<8x256xf32> to vector<8x128xf32>
    %c0_11 = arith.constant 0 : index
    %c0_12 = arith.constant 0 : index
    %14 = vector.load %arg6[%c0_11, %c0_12] : memref<128x128xf32, #tpu.memory_space<vmem>>, vector<128x128xf32>
    %cst_13 = arith.constant dense<0.000000e+00> : vector<8x128xf32>
    %15 = tpu.matmul %12, %14, %cst_13 {dimension_numbers = #tpu.dot_dimension_numbers<[1], [0], [0], [1], [0, 0, 1, 1], [], []>} : vector<8x128xf32>, vector<128x128xf32>, vector<8x128xf32> -> vector<8x128xf32>
    %c0_14 = arith.constant 0 : index
    %c0_15 = arith.constant 0 : index
    %16 = vector.load %arg7[%c0_14, %c0_15] : memref<1x128xf32, #tpu.memory_space<vmem>>, vector<1x128xf32>
    %17 = vector.broadcast %16 : vector<1x128xf32> to vector<8x128xf32>
    %18 = arith.addf %15, %17 : vector<8x128xf32>
    %cst_16 = arith.constant 0.000000e+00 : f32
    %19 = vector.broadcast %cst_16 : f32 to vector<8x128xf32>
    %20 = arith.maximumf %18, %19 : vector<8x128xf32>
    %c0_17 = arith.constant 0 : index
    %c0_18 = arith.constant 0 : index
    %21 = vector.load %arg8[%c0_17, %c0_18] : memref<128x128xf32, #tpu.memory_space<vmem>>, vector<128x128xf32>
    %cst_19 = arith.constant dense<0.000000e+00> : vector<8x128xf32>
    %22 = tpu.matmul %13, %21, %cst_19 {dimension_numbers = #tpu.dot_dimension_numbers<[1], [0], [0], [1], [0, 0, 1, 1], [], []>} : vector<8x128xf32>, vector<128x128xf32>, vector<8x128xf32> -> vector<8x128xf32>
    %c0_20 = arith.constant 0 : index
    %c0_21 = arith.constant 0 : index
    %23 = vector.load %arg9[%c0_20, %c0_21] : memref<1x128xf32, #tpu.memory_space<vmem>>, vector<1x128xf32>
    %24 = vector.broadcast %23 : vector<1x128xf32> to vector<8x128xf32>
    %25 = arith.addf %22, %24 : vector<8x128xf32>
    %cst_22 = arith.constant 0.000000e+00 : f32
    %26 = vector.broadcast %cst_22 : f32 to vector<8x128xf32>
    %27 = arith.maximumf %25, %26 : vector<8x128xf32>
    %28 = tpu.concatenate %20, %27 in 1 : vector<8x128xf32>, vector<8x128xf32> -> vector<8x256xf32>
    %c0_23 = arith.constant 0 : index
    %c0_24 = arith.constant 0 : index
    %29 = vector.load %arg10[%c0_23, %c0_24] : memref<256x128xf32, #tpu.memory_space<vmem>>, vector<256x128xf32>
    %cst_25 = arith.constant dense<0.000000e+00> : vector<8x128xf32>
    %30 = tpu.matmul %28, %29, %cst_25 {dimension_numbers = #tpu.dot_dimension_numbers<[1], [0], [0], [1], [0, 0, 1, 1], [], []>} : vector<8x256xf32>, vector<256x128xf32>, vector<8x128xf32> -> vector<8x128xf32>
    %c0_26 = arith.constant 0 : index
    %c0_27 = arith.constant 0 : index
    %31 = vector.load %arg11[%c0_26, %c0_27] : memref<1x128xf32, #tpu.memory_space<vmem>>, vector<1x128xf32>
    %32 = vector.broadcast %31 : vector<1x128xf32> to vector<8x128xf32>
    %33 = arith.addf %30, %32 : vector<8x128xf32>
    %c0_28 = arith.constant 0 : index
    %c0_29 = arith.constant 0 : index
    %34 = vector.load %arg12[%c0_28, %c0_29] : memref<8x128xf32, #tpu.memory_space<vmem>>, vector<8x128xf32>
    tpu.vector_store %arg12[%c0_28, %c0_29], %33 {strides = array<i32>} : memref<8x128xf32, #tpu.memory_space<vmem>>, vector<8x128xf32>,
    return
  }
  func.func @transform_0(%arg0: i32) -> (i32, i32) {
    %c0_i32 = arith.constant 0 : i32
    %c0_i32_0 = arith.constant 0 : i32
    return %arg0, %c0_i32 : i32, i32
  }
  func.func @transform_1(%arg0: i32) -> (i32, i32) {
    %c0_i32 = arith.constant 0 : i32
    %c0_i32_0 = arith.constant 0 : i32
    return %arg0, %c0_i32 : i32, i32
  }
  func.func @transform_2(%arg0: i32) -> (i32, i32) {
    %c0_i32 = arith.constant 0 : i32
    %c0_i32_0 = arith.constant 0 : i32
    %c0_i32_1 = arith.constant 0 : i32
    return %c0_i32, %c0_i32_0 : i32, i32
  }
  func.func @transform_3(%arg0: i32) -> (i32, i32) {
    %c0_i32 = arith.constant 0 : i32
    %c0_i32_0 = arith.constant 0 : i32
    %c0_i32_1 = arith.constant 0 : i32
    return %c0_i32, %c0_i32_0 : i32, i32
  }
  func.func @transform_4(%arg0: i32) -> (i32, i32) {
    %c0_i32 = arith.constant 0 : i32
    %c0_i32_0 = arith.constant 0 : i32
    %c0_i32_1 = arith.constant 0 : i32
    return %c0_i32, %c0_i32_0 : i32, i32
  }
  func.func @transform_5(%arg0: i32) -> (i32, i32) {
    %c0_i32 = arith.constant 0 : i32
    %c0_i32_0 = arith.constant 0 : i32
    %c0_i32_1 = arith.constant 0 : i32
    return %c0_i32, %c0_i32_0 : i32, i32
  }
  func.func @transform_6(%arg0: i32) -> (i32, i32) {
    %c0_i32 = arith.constant 0 : i32
    %c0_i32_0 = arith.constant 0 : i32
    %c0_i32_1 = arith.constant 0 : i32
    return %c0_i32, %c0_i32_0 : i32, i32
  }
  func.func @transform_7(%arg0: i32) -> (i32, i32) {
    %c0_i32 = arith.constant 0 : i32
    %c0_i32_0 = arith.constant 0 : i32
    %c0_i32_1 = arith.constant 0 : i32
    return %c0_i32, %c0_i32_0 : i32, i32
  }
  func.func @transform_8(%arg0: i32) -> (i32, i32) {
    %c0_i32 = arith.constant 0 : i32
    %c0_i32_0 = arith.constant 0 : i32
    %c0_i32_1 = arith.constant 0 : i32
    return %c0_i32, %c0_i32_0 : i32, i32
  }
  func.func @transform_9(%arg0: i32) -> (i32, i32) {
    %c0_i32 = arith.constant 0 : i32
    %c0_i32_0 = arith.constant 0 : i32
    %c0_i32_1 = arith.constant 0 : i32
    return %c0_i32, %c0_i32_0 : i32, i32
  }
  func.func @transform_10(%arg0: i32) -> (i32, i32) {
    %c0_i32 = arith.constant 0 : i32
    %c0_i32_0 = arith.constant 0 : i32
    %c0_i32_1 = arith.constant 0 : i32
    return %c0_i32, %c0_i32_0 : i32, i32
  }
  func.func @transform_11(%arg0: i32) -> (i32, i32) {
    %c0_i32 = arith.constant 0 : i32
    %c0_i32_0 = arith.constant 0 : i32
    return %arg0, %c0_i32 : i32, i32
  }
}

</mosaic_0001>

<llo_original>
// kernel: tpu_custom_call.1
$region0: #{tpu_custom_call.1}
  #allocation0 [shape = 'u32[]', space=smem, size = 0x4, offset = 0x4, fixed_abs, tag = 'smem constant byte address 0x4 - core index']
  #allocation1 [shape = 'u32[144,128]{1,0:T(1,128)}', space=vmem, size = 0x12000, scoped, tag = 'internal scratch']
  %s0 = inlined_call_operand.hbm [shape: f32[8,16], index: 0, kind: input, shape index: {}]
  %s1 = inlined_call_operand.hbm [shape: f32[8,8], index: 1, kind: input, shape index: {}]
  %s2 = inlined_call_operand.hbm [shape: f32[16,256], index: 2, kind: input, shape index: {}]
  %s3 = inlined_call_operand.hbm [shape: f32[8,256], index: 3, kind: input, shape index: {}]
  %s4 = inlined_call_operand.vmem [shape: f32[1,256], index: 4, kind: input, shape index: {}]
  %s5 = inlined_call_operand.hbm [shape: f32[128,128], index: 5, kind: input, shape index: {}]
  %s6 = inlined_call_operand.vmem [shape: f32[1,128], index: 6, kind: input, shape index: {}]
  %s7 = inlined_call_operand.hbm [shape: f32[128,128], index: 7, kind: input, shape index: {}]
  %s8 = inlined_call_operand.vmem [shape: f32[1,128], index: 8, kind: input, shape index: {}]
  %s9 = inlined_call_operand.hbm [shape: f32[256,128], index: 9, kind: input, shape index: {}]
  %s10 = inlined_call_operand.vmem [shape: f32[1,128], index: 10, kind: input, shape index: {}]
  %s11 = inlined_call_operand.hbm [shape: f32[8,128], index: 11, kind: output, shape index: {}]
  %s12 = sld [smem:[#allocation0]]
  $region82: #{tpu_custom_call.1} parent=0
    _
  %s14 = ssub.s32 1, %s12
  %s15 = scalar_select 0, %s14, %s12
  $region1: #{tpu_custom_call.1} parent=0
    #allocation2 [shape = 'u8[4096]{0}', space=vmem, size = 0x1000, scoped, tag = 'input window, operand 0, single buffered']
    #allocation3 [shape = 's32[1]{0}', space=sflag, size = 0x4, scoped, tag = 'scoped memory for tpu_custom_call.1']
    #allocation4 [shape = 's32[1]{0}', space=sflag, size = 0x4, scoped, tag = 'scoped memory for tpu_custom_call.1']
    #allocation5 [shape = 'u8[4096]{0}', space=vmem, size = 0x1000, scoped, tag = 'input window, operand 1, single buffered']
    #allocation6 [shape = 's32[1]{0}', space=sflag, size = 0x4, scoped, tag = 'scoped memory for tpu_custom_call.1']
    #allocation7 [shape = 'u8[16384]{0}', space=vmem, size = 0x4000, scoped, tag = 'input window, operand 2, single buffered']
    #allocation8 [shape = 'u8[8192]{0}', space=vmem, size = 0x2000, scoped, tag = 'input window, operand 3, single buffered']
    #allocation9 [shape = 's32[1]{0}', space=sflag, size = 0x4, scoped, tag = 'scoped memory for tpu_custom_call.1']
    #allocation10 [shape = 'u8[65536]{0}', space=vmem, size = 0x10000, scoped, tag = 'input window, operand 5, single buffered']
    #allocation11 [shape = 'u8[65536]{0}', space=vmem, size = 0x10000, scoped, tag = 'input window, operand 7, single buffered']
    #allocation12 [shape = 's32[1]{0}', space=sflag, size = 0x4, scoped, tag = 'scoped memory for tpu_custom_call.1']
    #allocation13 [shape = 'u8[131072]{0}', space=vmem, size = 0x20000, scoped, tag = 'input window, operand 9, single buffered']
    #allocation14 [shape = 'u8[4096]{0}', space=vmem, size = 0x1000, scoped, tag = 'output window, operand 0, single buffered']
    %16 = vsyncpa [#allocation3], 0
    %17 = vsyncpa [#allocation6], 0
    %18 = vsyncpa [#allocation9], 0
    %19 = vsyncpa [#allocation12], 0
    %20 = vsyncpa [#allocation4], 0
    // Predicated region
    $region2: #{tpu_custom_call.1} parent=1 // pred_check
      _
    $region3: #{tpu_custom_call.1} parent=1 // pred_check_branch
      %22 = sbr.rel (0) target = $region5
    $region4: #{tpu_custom_call.1} parent=1 // pred_region
      %s24 = ssub.s32 128, 128
      %25 = vsyncadd [#allocation3], %s24
      %s27 = sshll.u32 [#allocation2], 4
      %s28 = int_to_ptr.vmem [resolvable:$true] %s27
      %30 = dma.hbm_to_vmem [thread:$0]  %s0, 128, %s28, [#allocation3]
    $region5: #{tpu_custom_call.1} parent=1 // pred_fallthru
      _
    // Predicated region
    $region6: #{tpu_custom_call.1} parent=1 // pred_check
      _
    $region7: #{tpu_custom_call.1} parent=1 // pred_check_branch
      %32 = sbr.rel (0) target = $region9
    $region8: #{tpu_custom_call.1} parent=1 // pred_region
      %s34 = ssub.s32 128, 128
      %35 = vsyncadd [#allocation6], %s34
      %s37 = sshll.u32 [#allocation5], 4
      %s38 = int_to_ptr.vmem [resolvable:$true] %s37
      %40 = dma.hbm_to_vmem [thread:$0]  %s1, 128, %s38, [#allocation6]
    $region9: #{tpu_custom_call.1} parent=1 // pred_fallthru
      _
    // Predicated region
    $region10: #{tpu_custom_call.1} parent=1 // pred_check
      _
    $region11: #{tpu_custom_call.1} parent=1 // pred_check_branch
      %42 = sbr.rel (0) target = $region13
    $region12: #{tpu_custom_call.1} parent=1 // pred_region
      %s44 = ssub.s32 512, 512
      %45 = vsyncadd [#allocation6], %s44
      %s46 = sshll.u32 [#allocation7], 4
      %s47 = int_to_ptr.vmem [resolvable:$true] %s46
      %52 = dma.hbm_to_vmem [thread:$0]  %s2, 512, %s47, [#allocation6], 256, 256, 16
    $region13: #{tpu_custom_call.1} parent=1 // pred_fallthru
      _
    // Predicated region
    $region14: #{tpu_custom_call.1} parent=1 // pred_check
      _
    $region15: #{tpu_custom_call.1} parent=1 // pred_check_branch
      %54 = sbr.rel (0) target = $region17
    $region16: #{tpu_custom_call.1} parent=1 // pred_region
      %s56 = ssub.s32 256, 256
      %57 = vsyncadd [#allocation9], %s56
      %s59 = sshll.u32 [#allocation8], 4
      %s60 = int_to_ptr.vmem [resolvable:$true] %s59
      %62 = dma.hbm_to_vmem [thread:$0]  %s3, 256, %s60, [#allocation9]
    $region17: #{tpu_custom_call.1} parent=1 // pred_fallthru
      _
    // Predicated region
    $region18: #{tpu_custom_call.1} parent=1 // pred_check
      _
    $region19: #{tpu_custom_call.1} parent=1 // pred_check_branch
      %64 = sbr.rel (0) target = $region21
    $region20: #{tpu_custom_call.1} parent=1 // pred_region
      _
    $region21: #{tpu_custom_call.1} parent=1 // pred_fallthru
      _
    // Predicated region
    $region22: #{tpu_custom_call.1} parent=1 // pred_check
      _
    $region23: #{tpu_custom_call.1} parent=1 // pred_check_branch
      %66 = sbr.rel (0) target = $region25
    $region24: #{tpu_custom_call.1} parent=1 // pred_region
      %s68 = ssub.s32 2048, 2048
      %69 = vsyncadd [#allocation9], %s68
      %s70 = sshll.u32 [#allocation10], 4
      %s71 = int_to_ptr.vmem [resolvable:$true] %s70
      %76 = dma.hbm_to_vmem [thread:$0]  %s5, 2048, %s71, [#allocation9], 128, 128, 8
    $region25: #{tpu_custom_call.1} parent=1 // pred_fallthru
      _
    // Predicated region
    $region26: #{tpu_custom_call.1} parent=1 // pred_check
      _
    $region27: #{tpu_custom_call.1} parent=1 // pred_check_branch
      %78 = sbr.rel (0) target = $region29
    $region28: #{tpu_custom_call.1} parent=1 // pred_region
      _
    $region29: #{tpu_custom_call.1} parent=1 // pred_fallthru
      _
    // Predicated region
    $region30: #{tpu_custom_call.1} parent=1 // pred_check
      _
    $region31: #{tpu_custom_call.1} parent=1 // pred_check_branch
      %80 = sbr.rel (0) target = $region33
    $region32: #{tpu_custom_call.1} parent=1 // pred_region
      %s82 = ssub.s32 2048, 2048
      %83 = vsyncadd [#allocation12], %s82
      %s84 = sshll.u32 [#allocation11], 4
      %s85 = int_to_ptr.vmem [resolvable:$true] %s84
      %90 = dma.hbm_to_vmem [thread:$0]  %s7, 2048, %s85, [#allocation12], 128, 128, 8
    $region33: #{tpu_custom_call.1} parent=1 // pred_fallthru
      _
    // Predicated region
    $region34: #{tpu_custom_call.1} parent=1 // pred_check
      _
    $region35: #{tpu_custom_call.1} parent=1 // pred_check_branch
      %92 = sbr.rel (0) target = $region37
    $region36: #{tpu_custom_call.1} parent=1 // pred_region
      _
    $region37: #{tpu_custom_call.1} parent=1 // pred_fallthru
      _
    // Predicated region
    $region38: #{tpu_custom_call.1} parent=1 // pred_check
      _
    $region39: #{tpu_custom_call.1} parent=1 // pred_check_branch
      %94 = sbr.rel (0) target = $region41
    $region40: #{tpu_custom_call.1} parent=1 // pred_region
      %s96 = ssub.s32 4096, 4096
      %97 = vsyncadd [#allocation12], %s96
      %s98 = sshll.u32 [#allocation13], 4
      %s99 = int_to_ptr.vmem [resolvable:$true] %s98
      %104 = dma.hbm_to_vmem [thread:$0]  %s9, 4096, %s99, [#allocation12], 128, 128, 8
    $region41: #{tpu_custom_call.1} parent=1 // pred_fallthru
      _
    // Predicated region
    $region42: #{tpu_custom_call.1} parent=1 // pred_check
      _
    $region43: #{tpu_custom_call.1} parent=1 // pred_check_branch
      %106 = sbr.rel (0) target = $region45
    $region44: #{tpu_custom_call.1} parent=1 // pred_region
      _
    $region45: #{tpu_custom_call.1} parent=1 // pred_fallthru
      _
    // Predicated region
    $region46: #{tpu_custom_call.1} parent=1 // pred_check
      _
    $region47: #{tpu_custom_call.1} parent=1 // pred_check_branch
      %108 = sbr.rel (0) target = $region49
    $region48: #{tpu_custom_call.1} parent=1 // pred_region
      %109 = dma.done [#allocation3], 128
    $region49: #{tpu_custom_call.1} parent=1 // pred_fallthru
      _
    // Predicated region
    $region50: #{tpu_custom_call.1} parent=1 // pred_check
      _
    $region51: #{tpu_custom_call.1} parent=1 // pred_check_branch
      %111 = sbr.rel (0) target = $region53
    $region52: #{tpu_custom_call.1} parent=1 // pred_region
      %112 = dma.done [#allocation6], 128
    $region53: #{tpu_custom_call.1} parent=1 // pred_fallthru
      _
    // Predicated region
    $region54: #{tpu_custom_call.1} parent=1 // pred_check
      _
    $region55: #{tpu_custom_call.1} parent=1 // pred_check_branch
      %114 = sbr.rel (0) target = $region57
    $region56: #{tpu_custom_call.1} parent=1 // pred_region
      %115 = dma.done [#allocation6], 512
    $region57: #{tpu_custom_call.1} parent=1 // pred_fallthru
      _
    // Predicated region
    $region58: #{tpu_custom_call.1} parent=1 // pred_check
      _
    $region59: #{tpu_custom_call.1} parent=1 // pred_check_branch
      %117 = sbr.rel (0) target = $region61
    $region60: #{tpu_custom_call.1} parent=1 // pred_region
      %118 = dma.done [#allocation9], 256
    $region61: #{tpu_custom_call.1} parent=1 // pred_fallthru
      _
    // Predicated region
    $region62: #{tpu_custom_call.1} parent=1 // pred_check
      _
    $region63: #{tpu_custom_call.1} parent=1 // pred_check_branch
      %120 = sbr.rel (0) target = $region65
    $region64: #{tpu_custom_call.1} parent=1 // pred_region
      %121 = dma.done [#allocation9], 2048
    $region65: #{tpu_custom_call.1} parent=1 // pred_fallthru
      _
    // Predicated region
    $region66: #{tpu_custom_call.1} parent=1 // pred_check
      _
    $region67: #{tpu_custom_call.1} parent=1 // pred_check_branch
      %123 = sbr.rel (0) target = $region69
    $region68: #{tpu_custom_call.1} parent=1 // pred_region
      %124 = dma.done [#allocation12], 2048
    $region69: #{tpu_custom_call.1} parent=1 // pred_fallthru
      _
    // Predicated region
    $region70: #{tpu_custom_call.1} parent=1 // pred_check
      _
    $region71: #{tpu_custom_call.1} parent=1 // pred_check_branch
      %126 = sbr.rel (0) target = $region73
    $region72: #{tpu_custom_call.1} parent=1 // pred_region
      %127 = dma.done [#allocation12], 4096
    $region73: #{tpu_custom_call.1} parent=1 // pred_fallthru
      _
    %v128 = vld [vmem:[#allocation2] sm:$0xff]
    %v129 = vld [vmem:[#allocation7] sm:$0xff]
    %v130 = vld [vmem:[#allocation7 + $0x8] sm:$0xff]
    %v131 = vld [vmem:[#allocation7 + $0x10] sm:$0xff]
    %v132 = vld [vmem:[#allocation7 + $0x18] sm:$0xff]
    %v133 = vld [vmem:[#allocation5] sm:$0xff]
    %v134 = vld [vmem:[#allocation8] sm:$0xff]
    %v135 = vld [vmem:[#allocation8 + $0x8] sm:$0xff]
    %vm136 = vcmask 64512
    %v138 = vsel %vm136, %v133, 0
    %140 = vmatprep.subr.mxu0 %v135
    %141 = vmatpush1.msra.mxu0 %v134
    %142 = vmatprep.subr.mxu0 0.0
    %143 = vmatpush1.msra.mxu0 0.0
    %144 = vmatprep.subr.mxu0 0.0
    %145 = vmatpush1.msra.mxu0 0.0
    %146 = vmatprep.subr.mxu0 0.0
    %147 = vmatpush1.msra.mxu0 0.0
    %148 = vmatprep.subr.mxu0 0.0
    %149 = vmatpush1.msra.mxu0 0.0
    %150 = vmatprep.subr.mxu0 0.0
    %151 = vmatpush1.msra.mxu0 0.0
    %152 = vmatprep.subr.mxu0 0.0
    %153 = vmatpush1.msra.mxu0 0.0
    %154 = vmatprep.subr.mxu0 0.0
    %155 = vmatpush1.msra.mxu0 0.0
    %156 = vmatprep.subr.mxu0 0.0
    %157 = vmatpush1.msra.mxu0 0.0
    %158 = vmatprep.subr.mxu0 0.0
    %159 = vmatpush1.msra.mxu0 0.0
    %160 = vmatprep.subr.mxu0 0.0
    %161 = vmatpush1.msra.mxu0 0.0
    %162 = vmatprep.subr.mxu0 0.0
    %163 = vmatpush1.msra.mxu0 0.0
    %164 = vmatprep.subr.mxu0 0.0
    %165 = vmatpush1.msra.mxu0 0.0
    %166 = vmatprep.subr.mxu0 0.0
    %167 = vmatpush1.msra.mxu0 0.0
    %168 = vmatprep.subr.mxu0 0.0
    %169 = vmatpush1.msra.mxu0 0.0
    %170 = vmatprep.subr.mxu0 0.0
    %171 = vmatpush1.msra.mxu0 0.0
    %172 = vmatprep.subr.mxu0 0.0
    %173 = vmatpush1.msra.mxu0 0.0
    %174 = vmatprep.subr.mxu0 0.0
    %175 = vmatpush1.msra.mxu0 0.0
    %176 = vmatprep.subr.mxu0 0.0
    %177 = vmatpush1.msra.mxu0 0.0
    %178 = vmatprep.subr.mxu0 0.0
    %179 = vmatpush1.msra.mxu0 0.0
    %180 = vmatprep.subr.mxu0 0.0
    %181 = vmatpush1.msra.mxu0 0.0
    %182 = vmatprep.subr.mxu0 0.0
    %183 = vmatpush1.msra.mxu0 0.0
    %184 = vmatprep.subr.mxu0 0.0
    %185 = vmatpush1.msra.mxu0 0.0
    %186 = vmatprep.subr.mxu0 0.0
    %187 = vmatpush1.msra.mxu0 0.0
    %188 = vmatprep.subr.mxu0 0.0
    %189 = vmatpush1.msra.mxu0 0.0
    %190 = vmatprep.subr.mxu0 0.0
    %191 = vmatpush1.msra.mxu0 0.0
    %192 = vmatprep.subr.mxu0 0.0
    %193 = vmatpush1.msra.mxu0 0.0
    %194 = vmatprep.subr.mxu0 0.0
    %195 = vmatpush1.msra.mxu0 0.0
    %196 = vmatprep.subr.mxu0 0.0
    %197 = vmatpush1.msra.mxu0 0.0
    %198 = vmatprep.subr.mxu0 0.0
    %199 = vmatpush1.msra.mxu0 0.0
    %200 = vmatprep.subr.mxu0 0.0
    %201 = vmatpush1.msra.mxu0 0.0
    %202 = vmatprep.subr.mxu0 0.0
    %203 = vmatpush1.msra.mxu0 0.0
    %204 = vmatprep.mubr.f32.mxu0 0.0
    %205 = vmatmul.mubr.f32.gmra.mrb[0].mxu0 %v138
    %v206 = vpop.f32.mrb[0].mxu0
    %v207 = vadd.f32 0.0, %v206
    %v208 = vpop.f32.mrb[0].mxu0
    %v209 = vadd.f32 0.0, %v208
    %210 = vdwg.mxu0
    %vm211 = vcmask 130048
    %v213 = vsel %vm211, %v128, 0
    %215 = vmatprep.subr.mxu0 %v130
    %216 = vmatpush1.msra.mxu0 %v129
    %217 = vmatprep.subr.mxu0 %v132
    %218 = vmatpush1.msra.mxu0 %v131
    %219 = vmatprep.subr.mxu0 0.0
    %220 = vmatpush1.msra.mxu0 0.0
    %221 = vmatprep.subr.mxu0 0.0
    %222 = vmatpush1.msra.mxu0 0.0
    %223 = vmatprep.subr.mxu0 0.0
    %224 = vmatpush1.msra.mxu0 0.0
    %225 = vmatprep.subr.mxu0 0.0
    %226 = vmatpush1.msra.mxu0 0.0
    %227 = vmatprep.subr.mxu0 0.0
    %228 = vmatpush1.msra.mxu0 0.0
    %229 = vmatprep.subr.mxu0 0.0
    %230 = vmatpush1.msra.mxu0 0.0
    %231 = vmatprep.subr.mxu0 0.0
    %232 = vmatpush1.msra.mxu0 0.0
    %233 = vmatprep.subr.mxu0 0.0
    %234 = vmatpush1.msra.mxu0 0.0
    %235 = vmatprep.subr.mxu0 0.0
    %236 = vmatpush1.msra.mxu0 0.0
    %237 = vmatprep.subr.mxu0 0.0
    %238 = vmatpush1.msra.mxu0 0.0
    %239 = vmatprep.subr.mxu0 0.0
    %240 = vmatpush1.msra.mxu0 0.0
    %241 = vmatprep.subr.mxu0 0.0
    %242 = vmatpush1.msra.mxu0 0.0
    %243 = vmatprep.subr.mxu0 0.0
    %244 = vmatpush1.msra.mxu0 0.0
    %245 = vmatprep.subr.mxu0 0.0
    %246 = vmatpush1.msra.mxu0 0.0
    %247 = vmatprep.subr.mxu0 0.0
    %248 = vmatpush1.msra.mxu0 0.0
    %249 = vmatprep.subr.mxu0 0.0
    %250 = vmatpush1.msra.mxu0 0.0
    %251 = vmatprep.subr.mxu0 0.0
    %252 = vmatpush1.msra.mxu0 0.0
    %253 = vmatprep.subr.mxu0 0.0
    %254 = vmatpush1.msra.mxu0 0.0
    %255 = vmatprep.subr.mxu0 0.0
    %256 = vmatpush1.msra.mxu0 0.0
    %257 = vmatprep.subr.mxu0 0.0
    %258 = vmatpush1.msra.mxu0 0.0
    %259 = vmatprep.subr.mxu0 0.0
    %260 = vmatpush1.msra.mxu0 0.0
    %261 = vmatprep.subr.mxu0 0.0
    %262 = vmatpush1.msra.mxu0 0.0
    %263 = vmatprep.subr.mxu0 0.0
    %264 = vmatpush1.msra.mxu0 0.0
    %265 = vmatprep.subr.mxu0 0.0
    %266 = vmatpush1.msra.mxu0 0.0
    %267 = vmatprep.subr.mxu0 0.0
    %268 = vmatpush1.msra.mxu0 0.0
    %269 = vmatprep.subr.mxu0 0.0
    %270 = vmatpush1.msra.mxu0 0.0
    %271 = vmatprep.subr.mxu0 0.0
    %272 = vmatpush1.msra.mxu0 0.0
    %273 = vmatprep.subr.mxu0 0.0
    %274 = vmatpush1.msra.mxu0 0.0
    %275 = vmatprep.subr.mxu0 0.0
    %276 = vmatpush1.msra.mxu0 0.0
    %277 = vmatprep.subr.mxu0 0.0
    %278 = vmatpush1.msra.mxu0 0.0
    %279 = vmatprep.mubr.f32.mxu0 0.0
    %280 = vmatmul.mubr.f32.gmra.mrb[0].mxu0 %v213
    %v281 = vpop.f32.mrb[0].mxu0
    %v282 = vadd.f32 %v207, %v281
    %v283 = vpop.f32.mrb[0].mxu0
    %v284 = vadd.f32 %v209, %v283
    %285 = vdwg.mxu0
    %v286 = vld [vmem:[%s4] sm:$0x3]
    %v288 = vlaneseq
    %v289 = vshrl.u32 %v288, 7
    %v290 = vsub.s32 0, %v289
    %v291 = vrot.slane %v286, %v290
    %v292 = vlaneseq
    %v293 = vshrl.u32 %v292, 7
    %v294 = vsub.s32 1, %v293
    %v295 = vrot.slane %v286, %v294
    %v298 = vadd.f32 %v282, %v291
    %v299 = vadd.f32 %v284, %v295
    %v300 = vmax.f32 %v298, 0.0
    %v301 = vmax.f32 %v299, 0.0
    %v302 = vld [vmem:[#allocation10] sm:$0xff]
    %v303 = vld [vmem:[#allocation10 + $0x8] sm:$0xff]
    %v304 = vld [vmem:[#allocation10 + $0x10] sm:$0xff]
    %v305 = vld [vmem:[#allocation10 + $0x18] sm:$0xff]
    %v306 = vld [vmem:[#allocation10 + $0x20] sm:$0xff]
    %v307 = vld [vmem:[#allocation10 + $0x28] sm:$0xff]
    %v308 = vld [vmem:[#allocation10 + $0x30] sm:$0xff]
    %v309 = vld [vmem:[#allocation10 + $0x38] sm:$0xff]
    %v310 = vld [vmem:[#allocation10 + $0x40] sm:$0xff]
    %v311 = vld [vmem:[#allocation10 + $0x48] sm:$0xff]
    %v312 = vld [vmem:[#allocation10 + $0x50] sm:$0xff]
    %v313 = vld [vmem:[#allocation10 + $0x58] sm:$0xff]
    %v314 = vld [vmem:[#allocation10 + $0x60] sm:$0xff]
    %v315 = vld [vmem:[#allocation10 + $0x68] sm:$0xff]
    %v316 = vld [vmem:[#allocation10 + $0x70] sm:$0xff]
    %v317 = vld [vmem:[#allocation10 + $0x78] sm:$0xff]
    %v318 = vld [vmem:[%s6] sm:$0x1]
    %v320 = vlaneseq
    %v321 = vshrl.u32 %v320, 7
    %v322 = vsub.s32 0, %v321
    %v323 = vrot.slane %v318, %v322
    %325 = vmatprep.subr.mxu0 0.0
    %326 = vmatpush1.msra.mxu0 %v302
    %327 = vmatprep.subr.mxu0 0.0
    %328 = vmatpush1.msra.mxu0 %v303
    %329 = vmatprep.subr.mxu0 0.0
    %330 = vmatpush1.msra.mxu0 %v304
    %331 = vmatprep.subr.mxu0 0.0
    %332 = vmatpush1.msra.mxu0 %v305
    %333 = vmatprep.subr.mxu0 0.0
    %334 = vmatpush1.msra.mxu0 %v306
    %335 = vmatprep.subr.mxu0 0.0
    %336 = vmatpush1.msra.mxu0 %v307
    %337 = vmatprep.subr.mxu0 0.0
    %338 = vmatpush1.msra.mxu0 %v308
    %339 = vmatprep.subr.mxu0 0.0
    %340 = vmatpush1.msra.mxu0 %v309
    %341 = vmatprep.subr.mxu0 0.0
    %342 = vmatpush1.msra.mxu0 %v310
    %343 = vmatprep.subr.mxu0 0.0
    %344 = vmatpush1.msra.mxu0 %v311
    %345 = vmatprep.subr.mxu0 0.0
    %346 = vmatpush1.msra.mxu0 %v312
    %347 = vmatprep.subr.mxu0 0.0
    %348 = vmatpush1.msra.mxu0 %v313
    %349 = vmatprep.subr.mxu0 0.0
    %350 = vmatpush1.msra.mxu0 %v314
    %351 = vmatprep.subr.mxu0 0.0
    %352 = vmatpush1.msra.mxu0 %v315
    %353 = vmatprep.subr.mxu0 0.0
    %354 = vmatpush1.msra.mxu0 %v316
    %355 = vmatprep.subr.mxu0 0.0
    %356 = vmatpush1.msra.mxu0 %v317
    %357 = vmatprep.subr.mxu0 0.0
    %358 = vmatpush1.msra.mxu0 0.0
    %359 = vmatprep.subr.mxu0 0.0
    %360 = vmatpush1.msra.mxu0 0.0
    %361 = vmatprep.subr.mxu0 0.0
    %362 = vmatpush1.msra.mxu0 0.0
    %363 = vmatprep.subr.mxu0 0.0
    %364 = vmatpush1.msra.mxu0 0.0
    %365 = vmatprep.subr.mxu0 0.0
    %366 = vmatpush1.msra.mxu0 0.0
    %367 = vmatprep.subr.mxu0 0.0
    %368 = vmatpush1.msra.mxu0 0.0
    %369 = vmatprep.subr.mxu0 0.0
    %370 = vmatpush1.msra.mxu0 0.0
    %371 = vmatprep.subr.mxu0 0.0
    %372 = vmatpush1.msra.mxu0 0.0
    %373 = vmatprep.subr.mxu0 0.0
    %374 = vmatpush1.msra.mxu0 0.0
    %375 = vmatprep.subr.mxu0 0.0
    %376 = vmatpush1.msra.mxu0 0.0
    %377 = vmatprep.subr.mxu0 0.0
    %378 = vmatpush1.msra.mxu0 0.0
    %379 = vmatprep.subr.mxu0 0.0
    %380 = vmatpush1.msra.mxu0 0.0
    %381 = vmatprep.subr.mxu0 0.0
    %382 = vmatpush1.msra.mxu0 0.0
    %383 = vmatprep.subr.mxu0 0.0
    %384 = vmatpush1.msra.mxu0 0.0
    %385 = vmatprep.subr.mxu0 0.0
    %386 = vmatpush1.msra.mxu0 0.0
    %387 = vmatprep.subr.mxu0 0.0
    %388 = vmatpush1.msra.mxu0 0.0
    %389 = vmatprep.mubr.f32.mxu0 0.0
    %390 = vmatmul.mubr.f32.gmra.mrb[0].mxu0 %v300
    %v391 = vpop.f32.mrb[0].mxu0
    %v392 = vadd.f32 %v323, %v391
    %v393 = vpop.f32.mrb[0].mxu0
    %394 = vdwg.mxu0
    %v395 = vmax.f32 %v392, 0.0
    %v396 = vld [vmem:[#allocation11] sm:$0xff]
    %v397 = vld [vmem:[#allocation11 + $0x8] sm:$0xff]
    %v398 = vld [vmem:[#allocation11 + $0x10] sm:$0xff]
    %v399 = vld [vmem:[#allocation11 + $0x18] sm:$0xff]
    %v400 = vld [vmem:[#allocation11 + $0x20] sm:$0xff]
    %v401 = vld [vmem:[#allocation11 + $0x28] sm:$0xff]
    %v402 = vld [vmem:[#allocation11 + $0x30] sm:$0xff]
    %v403 = vld [vmem:[#allocation11 + $0x38] sm:$0xff]
    %v404 = vld [vmem:[#allocation11 + $0x40] sm:$0xff]
    %v405 = vld [vmem:[#allocation11 + $0x48] sm:$0xff]
    %v406 = vld [vmem:[#allocation11 + $0x50] sm:$0xff]
    %v407 = vld [vmem:[#allocation11 + $0x58] sm:$0xff]
    %v408 = vld [vmem:[#allocation11 + $0x60] sm:$0xff]
    %v409 = vld [vmem:[#allocation11 + $0x68] sm:$0xff]
    %v410 = vld [vmem:[#allocation11 + $0x70] sm:$0xff]
    %v411 = vld [vmem:[#allocation11 + $0x78] sm:$0xff]
    %v412 = vld [vmem:[%s8] sm:$0x1]
    %v414 = vlaneseq
    %v415 = vshrl.u32 %v414, 7
    %v416 = vsub.s32 0, %v415
    %v417 = vrot.slane %v412, %v416
    %419 = vmatprep.subr.mxu0 0.0
    %420 = vmatpush1.msra.mxu0 %v396
    %421 = vmatprep.subr.mxu0 0.0
    %422 = vmatpush1.msra.mxu0 %v397
    %423 = vmatprep.subr.mxu0 0.0
    %424 = vmatpush1.msra.mxu0 %v398
    %425 = vmatprep.subr.mxu0 0.0
    %426 = vmatpush1.msra.mxu0 %v399
    %427 = vmatprep.subr.mxu0 0.0
    %428 = vmatpush1.msra.mxu0 %v400
    %429 = vmatprep.subr.mxu0 0.0
    %430 = vmatpush1.msra.mxu0 %v401
    %431 = vmatprep.subr.mxu0 0.0
    %432 = vmatpush1.msra.mxu0 %v402
    %433 = vmatprep.subr.mxu0 0.0
    %434 = vmatpush1.msra.mxu0 %v403
    %435 = vmatprep.subr.mxu0 0.0
    %436 = vmatpush1.msra.mxu0 %v404
    %437 = vmatprep.subr.mxu0 0.0
    %438 = vmatpush1.msra.mxu0 %v405
    %439 = vmatprep.subr.mxu0 0.0
    %440 = vmatpush1.msra.mxu0 %v406
    %441 = vmatprep.subr.mxu0 0.0
    %442 = vmatpush1.msra.mxu0 %v407
    %443 = vmatprep.subr.mxu0 0.0
    %444 = vmatpush1.msra.mxu0 %v408
    %445 = vmatprep.subr.mxu0 0.0
    %446 = vmatpush1.msra.mxu0 %v409
    %447 = vmatprep.subr.mxu0 0.0
    %448 = vmatpush1.msra.mxu0 %v410
    %449 = vmatprep.subr.mxu0 0.0
    %450 = vmatpush1.msra.mxu0 %v411
    %451 = vmatprep.subr.mxu0 0.0
    %452 = vmatpush1.msra.mxu0 0.0
    %453 = vmatprep.subr.mxu0 0.0
    %454 = vmatpush1.msra.mxu0 0.0
    %455 = vmatprep.subr.mxu0 0.0
    %456 = vmatpush1.msra.mxu0 0.0
    %457 = vmatprep.subr.mxu0 0.0
    %458 = vmatpush1.msra.mxu0 0.0
    %459 = vmatprep.subr.mxu0 0.0
    %460 = vmatpush1.msra.mxu0 0.0
    %461 = vmatprep.subr.mxu0 0.0
    %462 = vmatpush1.msra.mxu0 0.0
    %463 = vmatprep.subr.mxu0 0.0
    %464 = vmatpush1.msra.mxu0 0.0
    %465 = vmatprep.subr.mxu0 0.0
    %466 = vmatpush1.msra.mxu0 0.0
    %467 = vmatprep.subr.mxu0 0.0
    %468 = vmatpush1.msra.mxu0 0.0
    %469 = vmatprep.subr.mxu0 0.0
    %470 = vmatpush1.msra.mxu0 0.0
    %471 = vmatprep.subr.mxu0 0.0
    %472 = vmatpush1.msra.mxu0 0.0
    %473 = vmatprep.subr.mxu0 0.0
    %474 = vmatpush1.msra.mxu0 0.0
    %475 = vmatprep.subr.mxu0 0.0
    %476 = vmatpush1.msra.mxu0 0.0
    %477 = vmatprep.subr.mxu0 0.0
    %478 = vmatpush1.msra.mxu0 0.0
    %479 = vmatprep.subr.mxu0 0.0
    %480 = vmatpush1.msra.mxu0 0.0
    %481 = vmatprep.subr.mxu0 0.0
    %482 = vmatpush1.msra.mxu0 0.0
    %483 = vmatprep.mubr.f32.mxu0 0.0
    %484 = vmatmul.mubr.f32.gmra.mrb[0].mxu0 %v301
    %v485 = vpop.f32.mrb[0].mxu0
    %v486 = vadd.f32 %v417, %v485
    %v487 = vpop.f32.mrb[0].mxu0
    %488 = vdwg.mxu0
    %v489 = vmax.f32 %v486, 0.0
    %v490 = vld [vmem:[#allocation13] sm:$0xff]
    %v491 = vld [vmem:[#allocation13 + $0x8] sm:$0xff]
    %v492 = vld [vmem:[#allocation13 + $0x10] sm:$0xff]
    %v493 = vld [vmem:[#allocation13 + $0x18] sm:$0xff]
    %v494 = vld [vmem:[#allocation13 + $0x20] sm:$0xff]
    %v495 = vld [vmem:[#allocation13 + $0x28] sm:$0xff]
    %v496 = vld [vmem:[#allocation13 + $0x30] sm:$0xff]
    %v497 = vld [vmem:[#allocation13 + $0x38] sm:$0xff]
    %v498 = vld [vmem:[#allocation13 + $0x40] sm:$0xff]
    %v499 = vld [vmem:[#allocation13 + $0x48] sm:$0xff]
    %v500 = vld [vmem:[#allocation13 + $0x50] sm:$0xff]
    %v501 = vld [vmem:[#allocation13 + $0x58] sm:$0xff]
    %v502 = vld [vmem:[#allocation13 + $0x60] sm:$0xff]
    %v503 = vld [vmem:[#allocation13 + $0x68] sm:$0xff]
    %v504 = vld [vmem:[#allocation13 + $0x70] sm:$0xff]
    %v505 = vld [vmem:[#allocation13 + $0x78] sm:$0xff]
    %v506 = vld [vmem:[#allocation13 + $0x80] sm:$0xff]
    %v507 = vld [vmem:[#allocation13 + $0x88] sm:$0xff]
    %v508 = vld [vmem:[#allocation13 + $0x90] sm:$0xff]
    %v509 = vld [vmem:[#allocation13 + $0x98] sm:$0xff]
    %v510 = vld [vmem:[#allocation13 + $0xa0] sm:$0xff]
    %v511 = vld [vmem:[#allocation13 + $0xa8] sm:$0xff]
    %v512 = vld [vmem:[#allocation13 + $0xb0] sm:$0xff]
    %v513 = vld [vmem:[#allocation13 + $0xb8] sm:$0xff]
    %v514 = vld [vmem:[#allocation13 + $0xc0] sm:$0xff]
    %v515 = vld [vmem:[#allocation13 + $0xc8] sm:$0xff]
    %v516 = vld [vmem:[#allocation13 + $0xd0] sm:$0xff]
    %v517 = vld [vmem:[#allocation13 + $0xd8] sm:$0xff]
    %v518 = vld [vmem:[#allocation13 + $0xe0] sm:$0xff]
    %v519 = vld [vmem:[#allocation13 + $0xe8] sm:$0xff]
    %v520 = vld [vmem:[#allocation13 + $0xf0] sm:$0xff]
    %v521 = vld [vmem:[#allocation13 + $0xf8] sm:$0xff]
    %v522 = vld [vmem:[%s10] sm:$0x1]
    %v524 = vlaneseq
    %v525 = vshrl.u32 %v524, 7
    %v526 = vsub.s32 0, %v525
    %v527 = vrot.slane %v522, %v526
    %529 = vmatprep.subr.mxu0 0.0
    %530 = vmatpush1.msra.mxu0 %v490
    %531 = vmatprep.subr.mxu0 0.0
    %532 = vmatpush1.msra.mxu0 %v491
    %533 = vmatprep.subr.mxu0 0.0
    %534 = vmatpush1.msra.mxu0 %v492
    %535 = vmatprep.subr.mxu0 0.0
    %536 = vmatpush1.msra.mxu0 %v493
    %537 = vmatprep.subr.mxu0 0.0
    %538 = vmatpush1.msra.mxu0 %v494
    %539 = vmatprep.subr.mxu0 0.0
    %540 = vmatpush1.msra.mxu0 %v495
    %541 = vmatprep.subr.mxu0 0.0
    %542 = vmatpush1.msra.mxu0 %v496
    %543 = vmatprep.subr.mxu0 0.0
    %544 = vmatpush1.msra.mxu0 %v497
    %545 = vmatprep.subr.mxu0 0.0
    %546 = vmatpush1.msra.mxu0 %v498
    %547 = vmatprep.subr.mxu0 0.0
    %548 = vmatpush1.msra.mxu0 %v499
    %549 = vmatprep.subr.mxu0 0.0
    %550 = vmatpush1.msra.mxu0 %v500
    %551 = vmatprep.subr.mxu0 0.0
    %552 = vmatpush1.msra.mxu0 %v501
    %553 = vmatprep.subr.mxu0 0.0
    %554 = vmatpush1.msra.mxu0 %v502
    %555 = vmatprep.subr.mxu0 0.0
    %556 = vmatpush1.msra.mxu0 %v503
    %557 = vmatprep.subr.mxu0 0.0
    %558 = vmatpush1.msra.mxu0 %v504
    %559 = vmatprep.subr.mxu0 0.0
    %560 = vmatpush1.msra.mxu0 %v505
    %561 = vmatprep.subr.mxu0 0.0
    %562 = vmatpush1.msra.mxu0 %v506
    %563 = vmatprep.subr.mxu0 0.0
    %564 = vmatpush1.msra.mxu0 %v507
    %565 = vmatprep.subr.mxu0 0.0
    %566 = vmatpush1.msra.mxu0 %v508
    %567 = vmatprep.subr.mxu0 0.0
    %568 = vmatpush1.msra.mxu0 %v509
    %569 = vmatprep.subr.mxu0 0.0
    %570 = vmatpush1.msra.mxu0 %v510
    %571 = vmatprep.subr.mxu0 0.0
    %572 = vmatpush1.msra.mxu0 %v511
    %573 = vmatprep.subr.mxu0 0.0
    %574 = vmatpush1.msra.mxu0 %v512
    %575 = vmatprep.subr.mxu0 0.0
    %576 = vmatpush1.msra.mxu0 %v513
    %577 = vmatprep.subr.mxu0 0.0
    %578 = vmatpush1.msra.mxu0 %v514
    %579 = vmatprep.subr.mxu0 0.0
    %580 = vmatpush1.msra.mxu0 %v515
    %581 = vmatprep.subr.mxu0 0.0
    %582 = vmatpush1.msra.mxu0 %v516
    %583 = vmatprep.subr.mxu0 0.0
    %584 = vmatpush1.msra.mxu0 %v517
    %585 = vmatprep.subr.mxu0 0.0
    %586 = vmatpush1.msra.mxu0 %v518
    %587 = vmatprep.subr.mxu0 0.0
    %588 = vmatpush1.msra.mxu0 %v519
    %589 = vmatprep.subr.mxu0 0.0
    %590 = vmatpush1.msra.mxu0 %v520
    %591 = vmatprep.subr.mxu0 0.0
    %592 = vmatpush1.msra.mxu0 %v521
    %593 = vmatprep.mubr.f32.mxu0 %v489
    %594 = vmatmul.mubr.f32.gmra.mrb[0].mxu0 %v395
    %v595 = vpop.f32.mrb[0].mxu0
    %v596 = vadd.f32 %v527, %v595
    %v597 = vpop.f32.mrb[0].mxu0
    %598 = vdwg.mxu0
    %599 = vst [vmem:[#allocation14] sm:$0xff] %v596
    // Predicated region
    $region74: #{tpu_custom_call.1} parent=1 // pred_check
      _
    $region75: #{tpu_custom_call.1} parent=1 // pred_check_branch
      %601 = sbr.rel (0) target = $region77
    $region76: #{tpu_custom_call.1} parent=1 // pred_region
      %s603 = ssub.s32 128, 128
      %604 = vsyncadd [#allocation4], %s603
      %s606 = sshll.u32 [#allocation14], 4
      %s607 = int_to_ptr.vmem [resolvable:$true] %s606
      %609 = dma.vmem_to_hbm [thread:$0]  %s607, 128, %s11, [#allocation4]
    $region77: #{tpu_custom_call.1} parent=1 // pred_fallthru
      _
    // Predicated region
    $region78: #{tpu_custom_call.1} parent=1 // pred_check
      _
    $region79: #{tpu_custom_call.1} parent=1 // pred_check_branch
      %611 = sbr.rel (0) target = $region81
    $region80: #{tpu_custom_call.1} parent=1 // pred_region
      %612 = dma.done [#allocation4], 128
    $region81: #{tpu_custom_call.1} parent=1 // pred_fallthru
      _
    %613 = vsyncpa [#allocation3], 1
    %614 = vsyncpa [#allocation6], 1
    %615 = vsyncpa [#allocation9], 1
    %616 = vsyncpa [#allocation12], 1
    %617 = vsyncpa [#allocation4], 1

</llo_original>
